<compile_context>
chip_gen: v6e
topology: v6e:2x2x1
jax: 0.10.0
libtpu: 0.0.40
codegen_flags: <defaults>
</compile_context>

<pallas_src>
import math

import jax
import jax.numpy as jnp
from jax.experimental import pallas as pl
from jax.experimental.pallas import tpu as pltpu

W = 10.0
EPSILON = 2.0
INV_EPSILON = 1.0 / EPSILON
C = W * (1.0 - math.log(1.0 + W / EPSILON))

LANES = 512  # lane-dense last dim (multiple of 128)


def _wing_loss_kernel(gt_ref, pred_ref, out_ref):
    # gt_ref / pred_ref: (tile_rows, LANES) tile in VMEM (native dtype)
    # out_ref:           (1, 1, LANES) per-tile partial sums (f32)
    gt = gt_ref[...].astype(jnp.float32)
    pred = pred_ref[...].astype(jnp.float32)

    x = gt - pred
    ax = jnp.abs(x)
    # torch.where(w > |x|, w*log(1 + |x|/eps), |x| - c); continuous at |x| == w
    losses = jnp.where(ax < W, W * jnp.log(1.0 + ax * INV_EPSILON), ax - C)

    # Single cross-sublane reduce; keep a lane-dense (1, LANES) slab so the
    # store is an unmasked vst.
    out_ref[0] = jnp.sum(losses, axis=0, keepdims=True)


def landmark_loss(landmark_gt, landmark_pred, n_landmark=5, block_rows=1024):
    """Equivalent of LandmarkLoss(n_landmark).forward(landmark_gt, landmark_pred)."""
    feat = n_landmark * 2
    gt_flat = jnp.reshape(landmark_gt, (-1,))
    pred_flat = jnp.reshape(landmark_pred, (-1,))
    n_elems = gt_flat.shape[0]
    batch = n_elems // feat  # true batch size (static)

    # Lane-dense layout: rows of LANES elements, rows rounded up to a multiple
    # of 8 sublanes; tile rows rounded to a multiple of 8 as well.
    block_rows = max(8, (block_rows // 8) * 8)
    rows_needed = pl.cdiv(n_elems, LANES)
    rows_needed = pl.cdiv(rows_needed, 8) * 8
    tile_rows = min(block_rows, rows_needed)
    num_tiles = pl.cdiv(rows_needed, tile_rows)
    total_rows = num_tiles * tile_rows
    pad = total_rows * LANES - n_elems

    # Zero padding -> gt == pred on the pad -> wing loss contribution is 0.
    gt2d = jnp.pad(gt_flat, (0, pad)).reshape(total_rows, LANES)
    pred2d = jnp.pad(pred_flat, (0, pad)).reshape(total_rows, LANES)

    partials = pl.pallas_call(
        _wing_loss_kernel,
        out_shape=jax.ShapeDtypeStruct((num_tiles, 1, LANES), jnp.float32),
        grid_spec=pltpu.PrefetchScalarGridSpec(
            num_scalar_prefetch=0,
            grid=(num_tiles,),
            in_specs=[
                pl.BlockSpec((tile_rows, LANES), lambda i: (i, 0)),
                pl.BlockSpec((tile_rows, LANES), lambda i: (i, 0)),
            ],
            out_specs=pl.BlockSpec((1, 1, LANES), lambda i: (i, 0, 0)),
        ),
        compiler_params=pltpu.CompilerParams(
            dimension_semantics=("parallel",),
        ),
    )(gt2d, pred2d)

    # Tiny final reduction + divide by the TRUE batch size (not padded rows).
    return jnp.sum(partials) / batch


def _wing_loss_ref(y_true, y_pred, n_landmark):
    # Pure-JAX reference mirroring the PyTorch code, for sanity checking.
    y_pred = jnp.reshape(y_pred, (-1, n_landmark, 2)).astype(jnp.float32)
    y_true = jnp.reshape(y_true, (-1, n_landmark, 2)).astype(jnp.float32)
    x = y_true - y_pred
    ax = jnp.abs(x)
    losses = jnp.where(W > ax, W * jnp.log(1.0 + ax / EPSILON), ax - C)
    return jnp.mean(jnp.sum(losses, axis=(1, 2)), axis=0)


if __name__ == "__main__":
    key = jax.random.PRNGKey(0)

    # --- test 1: small shape matching the module (batch=2, n_landmark=5) ---
    n_landmark = 5
    batch = 2
    k1, k2, k3 = jax.random.split(key, 3)
    landmark_gt = jax.random.uniform(k1, (batch, n_landmark * 2), dtype=jnp.float32)
    # include some large errors so both branches of the wing loss are exercised
    landmark_pred = (jax.random.uniform(k2, (batch, n_landmark * 2), dtype=jnp.float32)
                     + 15.0 * jax.random.normal(k3, (batch, n_landmark * 2),
                                                dtype=jnp.float32))

    loss = landmark_loss(landmark_gt, landmark_pred, n_landmark=n_landmark)
    loss = jax.block_until_ready(loss)
    ref = _wing_loss_ref(landmark_gt, landmark_pred, n_landmark)
    assert jnp.allclose(loss, ref, rtol=1e-5, atol=1e-5), (loss, ref)

    # --- test 2: modest shape forcing multiple grid tiles (exercise pipeline) ---
    n_landmark2 = 68
    batch2 = 300
    k4, k5, k6 = jax.random.split(jax.random.PRNGKey(1), 3)
    gt2 = jax.random.uniform(k4, (batch2, n_landmark2 * 2), dtype=jnp.float32)
    pred2 = (jax.random.uniform(k5, (batch2, n_landmark2 * 2), dtype=jnp.float32)
             + 15.0 * jax.random.normal(k6, (batch2, n_landmark2 * 2),
                                        dtype=jnp.float32))
    loss2 = landmark_loss(gt2, pred2, n_landmark=n_landmark2, block_rows=16)
    loss2 = jax.block_until_ready(loss2)
    ref2 = _wing_loss_ref(gt2, pred2, n_landmark2)
    assert jnp.allclose(loss2, ref2, rtol=1e-4, atol=1e-4), (loss2, ref2)

    print("KERNEL_OK")
</pallas_src>

<mosaic_0001>
module attributes {stable_mosaic.version = 11 : i64} {
  func.func @_wing_loss_kernel(%arg0: i32, %arg1: memref<8x512xf32, #tpu.memory_space<vmem>>, %arg2: memref<8x512xf32, #tpu.memory_space<vmem>>, %arg3: memref<1x1x512xf32, #tpu.memory_space<vmem>>) attributes {dimension_semantics = [#tpu.dimension_semantics<parallel>], iteration_bounds = array<i64: 1>, scalar_prefetch = 0 : i64, scratch_operands = 0 : i64, tpu.core_type = #tpu.core_type<tc>, window_params = [{transform_indices = @transform_0, window_bounds = array<i64: 8, 512>}, {transform_indices = @transform_1, window_bounds = array<i64: 8, 512>}, {transform_indices = @transform_2, window_bounds = array<i64: 1, 1, 512>}]} {
    %c0 = arith.constant 0 : index
    %c0_0 = arith.constant 0 : index
    %0 = vector.load %arg1[%c0, %c0_0] : memref<8x512xf32, #tpu.memory_space<vmem>>, vector<8x512xf32>
    %c0_1 = arith.constant 0 : index
    %c0_2 = arith.constant 0 : index
    %1 = vector.load %arg2[%c0_1, %c0_2] : memref<8x512xf32, #tpu.memory_space<vmem>>, vector<8x512xf32>
    %2 = arith.subf %0, %1 : vector<8x512xf32>
    %3 = math.absf %2 : vector<8x512xf32>
    %cst = arith.constant 1.000000e+01 : f32
    %4 = vector.broadcast %cst : f32 to vector<8x512xf32>
    %5 = arith.cmpf olt, %3, %4 : vector<8x512xf32>
    %cst_3 = arith.constant 5.000000e-01 : f32
    %6 = vector.broadcast %cst_3 : f32 to vector<8x512xf32>
    %7 = arith.mulf %3, %6 : vector<8x512xf32>
    %cst_4 = arith.constant 1.000000e+00 : f32
    %8 = vector.broadcast %cst_4 : f32 to vector<8x512xf32>
    %9 = arith.addf %8, %7 : vector<8x512xf32>
    %10 = math.log %9 : vector<8x512xf32>
    %cst_5 = arith.constant 1.000000e+01 : f32
    %11 = vector.broadcast %cst_5 : f32 to vector<8x512xf32>
    %12 = arith.mulf %11, %10 : vector<8x512xf32>
    %cst_6 = arith.constant -7.9175949 : f32
    %13 = vector.broadcast %cst_6 : f32 to vector<8x512xf32>
    %14 = arith.subf %3, %13 : vector<8x512xf32>
    %15 = arith.select %5, %12, %14 : vector<8x512xi1>, vector<8x512xf32>
    %cst_7 = arith.constant dense<0.000000e+00> : vector<512xf32>
    %16 = vector.multi_reduction <add>, %15, %cst_7 [0] : vector<8x512xf32> to vector<512xf32>
    %17 = vector.shape_cast %16 : vector<512xf32> to vector<1x512xf32>
    %c0_8 = arith.constant 0 : index
    %c0_9 = arith.constant 0 : index
    %c0_10 = arith.constant 0 : index
    %18 = vector.load %arg3[%c0_8, %c0_9, %c0_10] : memref<1x1x512xf32, #tpu.memory_space<vmem>>, vector<1x1x512xf32>
    %19 = vector.shape_cast %18 : vector<1x1x512xf32> to vector<1x512xf32>
    %20 = vector.shape_cast %17 : vector<1x512xf32> to vector<1x1x512xf32>
    tpu.vector_store %arg3[%c0_8, %c0_9, %c0_10], %20 {strides = array<i32>} : memref<1x1x512xf32, #tpu.memory_space<vmem>>, vector<1x1x512xf32>,
    return
  }
  func.func @transform_0(%arg0: i32) -> (i32, i32) {
    %c0_i32 = arith.constant 0 : i32
    %c0_i32_0 = arith.constant 0 : i32
    return %arg0, %c0_i32 : i32, i32
  }
  func.func @transform_1(%arg0: i32) -> (i32, i32) {
    %c0_i32 = arith.constant 0 : i32
    %c0_i32_0 = arith.constant 0 : i32
    return %arg0, %c0_i32 : i32, i32
  }
  func.func @transform_2(%arg0: i32) -> (i32, i32, i32) {
    %c0_i32 = arith.constant 0 : i32
    %c0_i32_0 = arith.constant 0 : i32
    %c0_i32_1 = arith.constant 0 : i32
    return %arg0, %c0_i32, %c0_i32_0 : i32, i32, i32
  }
}

</mosaic_0001>

<llo_original>
// kernel: tpu_custom_call.1
$region0: #{tpu_custom_call.1}
  #allocation0 [shape = 'u32[]', space=smem, size = 0x4, offset = 0x4, fixed_abs, tag = 'smem constant byte address 0x4 - core index']
  #allocation1 [shape = 'u32[144,128]{1,0:T(1,128)}', space=vmem, size = 0x12000, scoped, tag = 'internal scratch']
  %s0 = inlined_call_operand.hbm [shape: f32[8,512], index: 0, kind: input, shape index: {}]
  %s1 = inlined_call_operand.hbm [shape: f32[8,512], index: 1, kind: input, shape index: {}]
  %s2 = inlined_call_operand.hbm [shape: f32[1,1,512], index: 2, kind: output, shape index: {}]
  %s3 = sld [smem:[#allocation0]]
  $region26: #{tpu_custom_call.1} parent=0
    _
  %s5 = ssub.s32 1, %s3
  %s6 = scalar_select 0, %s5, %s3
  $region1: #{tpu_custom_call.1} parent=0
    #allocation2 [shape = 'u8[16384]{0}', space=vmem, size = 0x4000, scoped, tag = 'input window, operand 0, single buffered']
    #allocation3 [shape = 's32[1]{0}', space=sflag, size = 0x4, scoped, tag = 'scoped memory for tpu_custom_call.1']
    #allocation4 [shape = 's32[1]{0}', space=sflag, size = 0x4, scoped, tag = 'scoped memory for tpu_custom_call.1']
    #allocation5 [shape = 'u8[16384]{0}', space=vmem, size = 0x4000, scoped, tag = 'input window, operand 1, single buffered']
    #allocation6 [shape = 's32[1]{0}', space=sflag, size = 0x4, scoped, tag = 'scoped memory for tpu_custom_call.1']
    #allocation7 [shape = 'u8[2048]{0}', space=vmem, size = 0x800, scoped, tag = 'output window, operand 0, single buffered']
    %7 = vsyncpa [#allocation3], 0
    %8 = vsyncpa [#allocation6], 0
    %9 = vsyncpa [#allocation4], 0
    // Predicated region
    $region2: #{tpu_custom_call.1} parent=1 // pred_check
      _
    $region3: #{tpu_custom_call.1} parent=1 // pred_check_branch
      %11 = sbr.rel (0) target = $region5
    $region4: #{tpu_custom_call.1} parent=1 // pred_region
      %s13 = ssub.s32 512, 512
      %14 = vsyncadd [#allocation3], %s13
      %s16 = sshll.u32 [#allocation2], 4
      %s17 = int_to_ptr.vmem [resolvable:$true] %s16
      %19 = dma.hbm_to_vmem [thread:$0]  %s0, 512, %s17, [#allocation3]
    $region5: #{tpu_custom_call.1} parent=1 // pred_fallthru
      _
    // Predicated region
    $region6: #{tpu_custom_call.1} parent=1 // pred_check
      _
    $region7: #{tpu_custom_call.1} parent=1 // pred_check_branch
      %21 = sbr.rel (0) target = $region9
    $region8: #{tpu_custom_call.1} parent=1 // pred_region
      %s23 = ssub.s32 512, 512
      %24 = vsyncadd [#allocation6], %s23
      %s26 = sshll.u32 [#allocation5], 4
      %s27 = int_to_ptr.vmem [resolvable:$true] %s26
      %29 = dma.hbm_to_vmem [thread:$0]  %s1, 512, %s27, [#allocation6]
    $region9: #{tpu_custom_call.1} parent=1 // pred_fallthru
      _
    // Predicated region
    $region10: #{tpu_custom_call.1} parent=1 // pred_check
      _
    $region11: #{tpu_custom_call.1} parent=1 // pred_check_branch
      %31 = sbr.rel (0) target = $region13
    $region12: #{tpu_custom_call.1} parent=1 // pred_region
      %32 = dma.done [#allocation3], 512
    $region13: #{tpu_custom_call.1} parent=1 // pred_fallthru
      _
    // Predicated region
    $region14: #{tpu_custom_call.1} parent=1 // pred_check
      _
    $region15: #{tpu_custom_call.1} parent=1 // pred_check_branch
      %34 = sbr.rel (0) target = $region17
    $region16: #{tpu_custom_call.1} parent=1 // pred_region
      %35 = dma.done [#allocation6], 512
    $region17: #{tpu_custom_call.1} parent=1 // pred_fallthru
      _
    %v36 = vld [vmem:[#allocation2] sm:$0xff]
    %v37 = vld [vmem:[#allocation2 + $0x8] sm:$0xff]
    %v38 = vld [vmem:[#allocation2 + $0x10] sm:$0xff]
    %v39 = vld [vmem:[#allocation2 + $0x18] sm:$0xff]
    %v40 = vld [vmem:[#allocation5] sm:$0xff]
    %v41 = vld [vmem:[#allocation5 + $0x8] sm:$0xff]
    %v42 = vld [vmem:[#allocation5 + $0x10] sm:$0xff]
    %v43 = vld [vmem:[#allocation5 + $0x18] sm:$0xff]
    %v44 = vsub.f32 %v36, %v40
    %v45 = vsub.f32 %v37, %v41
    %v46 = vsub.f32 %v38, %v42
    %v47 = vsub.f32 %v39, %v43
    %v48 = vand.u32 2147483647, %v44
    %v49 = vand.u32 2147483647, %v45
    %v50 = vand.u32 2147483647, %v46
    %v51 = vand.u32 2147483647, %v47
    %vm52 = vcmp.lt.f32.partialorder %v48, 10.0
    %vm53 = vcmp.lt.f32.partialorder %v49, 10.0
    %vm54 = vcmp.lt.f32.partialorder %v50, 10.0
    %vm55 = vcmp.lt.f32.partialorder %v51, 10.0
    %v56 = vmul.f32 %v48, 0.5
    %v57 = vmul.f32 %v49, 0.5
    %v58 = vmul.f32 %v50, 0.5
    %v59 = vmul.f32 %v51, 0.5
    %v60 = vadd.f32 %v56, 1.0
    %v61 = vadd.f32 %v57, 1.0
    %v62 = vadd.f32 %v58, 1.0
    %v63 = vadd.f32 %v59, 1.0
    %v64 = vlog2.pop %v60
    %v65 = vmul.f32 %v64, 0.6931472
    %v66 = vlog2.pop %v61
    %v67 = vmul.f32 %v66, 0.6931472
    %v68 = vlog2.pop %v62
    %v69 = vmul.f32 %v68, 0.6931472
    %v70 = vlog2.pop %v63
    %v71 = vmul.f32 %v70, 0.6931472
    %v72 = vmul.f32 %v65, 10.0
    %v73 = vmul.f32 %v67, 10.0
    %v74 = vmul.f32 %v69, 10.0
    %v75 = vmul.f32 %v71, 10.0
    %v76 = vsub.f32 %v48, -7.917595
    %v77 = vsub.f32 %v49, -7.917595
    %v78 = vsub.f32 %v50, -7.917595
    %v79 = vsub.f32 %v51, -7.917595
    %v80 = vsel %vm52, %v72, %v76
    %v81 = vsel %vm53, %v73, %v77
    %v82 = vsel %vm54, %v74, %v78
    %v83 = vsel %vm55, %v75, %v79
    %v84 = vrot.slane %v80, 4
    %v85 = vadd.f32 %v80, %v84
    %v86 = vrot.slane %v85, 2
    %v87 = vadd.f32 %v85, %v86
    %v88 = vrot.slane %v87, 1
    %v89 = vadd.f32 %v87, %v88
    %v90 = vrot.slane %v81, 4
    %v91 = vadd.f32 %v81, %v90
    %v92 = vrot.slane %v91, 2
    %v93 = vadd.f32 %v91, %v92
    %v94 = vrot.slane %v93, 1
    %v95 = vadd.f32 %v93, %v94
    %v96 = vrot.slane %v82, 4
    %v97 = vadd.f32 %v82, %v96
    %v98 = vrot.slane %v97, 2
    %v99 = vadd.f32 %v97, %v98
    %v100 = vrot.slane %v99, 1
    %v101 = vadd.f32 %v99, %v100
    %v102 = vrot.slane %v83, 4
    %v103 = vadd.f32 %v83, %v102
    %v104 = vrot.slane %v103, 2
    %v105 = vadd.f32 %v103, %v104
    %v106 = vrot.slane %v105, 1
    %v107 = vadd.f32 %v105, %v106
    %v112 = vcombine.low %v89, %v95
    %v113 = vcombine.low %v101, %v107
    %v115 = vunpack.c.l.s4 1966171168
    %v116 = vunpack.c.0.s8 %v115
    %v117 = vlaneseq
    %v118 = vshrl.u32 %v117, 7
    %v119 = vsub.s32 %v116, %v118
    %v120 = vrot.slane %v112, %v119
    %v122 = vunpack.c.l.s4 1966171168
    %v123 = vunpack.c.0.s8 %v122
    %v124 = vlaneseq
    %v125 = vshrl.u32 %v124, 7
    %v126 = vsub.s32 %v123, %v125
    %v127 = vrot.slane %v113, %v126
    %v128 = vcombine.low %v120, %v127
    %v130 = vunpack.c.l.s4 1966171168
    %v131 = vunpack.c.0.s8 %v130
    %v132 = vlaneseq
    %v133 = vshrl.u32 %v132, 7
    %v134 = vsub.s32 %v131, %v133
    %v135 = vrot.slane %v128, %v134
    %v137 = vlaneseq
    %vm138 = vcmp.ge.s32.totalorder %v137, 0
    %vm139 = vcmp.lt.s32.totalorder %v137, 512
    %vm140 = vmand %vm138, %vm139
    %141 = vst.msk [vmem:[#allocation7] sm:$0xf] %vm140, %v135
    // Predicated region
    $region18: #{tpu_custom_call.1} parent=1 // pred_check
      _
    $region19: #{tpu_custom_call.1} parent=1 // pred_check_branch
      %143 = sbr.rel (0) target = $region21
    $region20: #{tpu_custom_call.1} parent=1 // pred_region
      %s145 = ssub.s32 64, 64
      %146 = vsyncadd [#allocation4], %s145
      %s148 = sshll.u32 [#allocation7], 4
      %s149 = int_to_ptr.vmem [resolvable:$true] %s148
      %151 = dma.vmem_to_hbm [thread:$0]  %s149, 64, %s2, [#allocation4]
    $region21: #{tpu_custom_call.1} parent=1 // pred_fallthru
      _
    // Predicated region
    $region22: #{tpu_custom_call.1} parent=1 // pred_check
      _
    $region23: #{tpu_custom_call.1} parent=1 // pred_check_branch
      %153 = sbr.rel (0) target = $region25
    $region24: #{tpu_custom_call.1} parent=1 // pred_region
      %154 = dma.done [#allocation4], 64
    $region25: #{tpu_custom_call.1} parent=1 // pred_fallthru
      _
    %155 = vsyncpa [#allocation3], 1
    %156 = vsyncpa [#allocation6], 1
    %157 = vsyncpa [#allocation4], 1

</llo_original>
